<compile_context>
chip_gen: v7x
topology: tpu7x:2x2x1
jax: 0.10.0
libtpu: 0.0.40
codegen_flags: <defaults>
</compile_context>

<pallas_src>
import functools

import jax
import jax.numpy as jnp
from jax.experimental import pallas as pl
from jax.experimental.pallas import tpu as pltpu


# ----------------------------- Pallas kernel -----------------------------

def question_gru_kernel(x_ref, wih_t_ref, whh_t_ref, bih_ref, bhh_ref, h_ref,
                        *, seq_len, batch):
    """Fused GRU over a whole (short) question sequence.

    x_ref:     (T*B, H)  time-major flattened embedded tokens (row t*B + b)
    wih_t_ref: (H, 3H)   input->hidden weights, pre-transposed (PyTorch gate order r, z, n)
    whh_t_ref: (H, 3H)   hidden->hidden weights, pre-transposed
    bih_ref:   (1, 3H)
    bhh_ref:   (1, 3H)
    h_ref:     (B, H)    output: final hidden state h_T
    """
    T, B = seq_len, batch
    H = h_ref.shape[1]

    # Hoisted input-side matmul: one (T*B, H) x (H, 3H) MXU op instead of T tiny ones.
    # bf16 operands feed the MXU; accumulation and all gate math stay f32.
    gi_all = jnp.dot(x_ref[...].astype(jnp.bfloat16),
                     wih_t_ref[...].astype(jnp.bfloat16),
                     preferred_element_type=jnp.float32) + bih_ref[...]       # (T*B, 3H)

    whh_t = whh_t_ref[...].astype(jnp.bfloat16)
    bhh = bhh_ref[...]

    h = jnp.zeros((B, H), jnp.float32)
    # Fully-unrolled recurrence (T is small & static) -> cross-iteration scheduling.
    for t in range(T):
        gi = gi_all[t * B:(t + 1) * B, :]                                     # (B, 3H), static slice
        gh = jnp.dot(h.astype(jnp.bfloat16), whh_t,
                     preferred_element_type=jnp.float32) + bhh                # (B, 3H)
        r = jax.nn.sigmoid(gi[:, 0:H] + gh[:, 0:H])
        z = jax.nn.sigmoid(gi[:, H:2 * H] + gh[:, H:2 * H])
        n = jnp.tanh(gi[:, 2 * H:3 * H] + r * gh[:, 2 * H:3 * H])
        h = (1.0 - z) * n + z * h
    h_ref[...] = h


# ----------------------------- wrapper -----------------------------

def question_module(questions, embedding, gru_params):
    """questions: (B, T) int32 token ids; embedding: (V, H). Returns (B, 1, H)."""
    B, T = questions.shape
    H = embedding.shape[1]

    # Embedding lookup (gather) in XLA glue; everything after is one fused Pallas kernel.
    x = jnp.take(embedding, questions.reshape(-1), axis=0).reshape(B, T, H)
    x_tm = jnp.transpose(x, (1, 0, 2)).reshape(T * B, H).astype(jnp.float32)  # time-major, 2-D

    args = (x_tm, gru_params['wih_t'], gru_params['whh_t'],
            gru_params['bih'], gru_params['bhh'])
    in_specs = [pl.BlockSpec(a.shape, lambda i: (0, 0)) for a in args]        # full-array blocks

    h_final = pl.pallas_call(
        functools.partial(question_gru_kernel, seq_len=T, batch=B),
        out_shape=jax.ShapeDtypeStruct((B, H), jnp.float32),
        grid=(1,),
        in_specs=in_specs,
        out_specs=pl.BlockSpec((B, H), lambda i: (0, 0)),
        compiler_params=pltpu.CompilerParams(dimension_semantics=("arbitrary",)),
    )(*args)

    return h_final[:, None, :]          # (B, 1, H) == h_n.transpose(0, 1) in PyTorch


# ----------------------------- reference (pure JAX, f32) -----------------------------

def question_module_ref(questions, embedding, p):
    B, T = questions.shape
    H = embedding.shape[1]
    x = jnp.take(embedding, questions.reshape(-1), axis=0).reshape(B, T, H)
    h = jnp.zeros((B, H), jnp.float32)
    for t in range(T):
        gi = x[:, t, :] @ p['wih_t'] + p['bih']
        gh = h @ p['whh_t'] + p['bhh']
        r = jax.nn.sigmoid(gi[:, :H] + gh[:, :H])
        z = jax.nn.sigmoid(gi[:, H:2 * H] + gh[:, H:2 * H])
        n = jnp.tanh(gi[:, 2 * H:] + r * gh[:, 2 * H:])
        h = (1.0 - z) * n + z * h
    return h[:, None, :]


# ----------------------------- parameters -----------------------------

def init_params(key, vocab, hidden):
    ks = jax.random.split(key, 5)
    emb = jax.random.normal(ks[0], (vocab, hidden), dtype=jnp.float32)        # nn.Embedding default
    bound = 1.0 / (hidden ** 0.5)                                             # nn.GRU default init
    u = lambda k, s: jax.random.uniform(k, s, jnp.float32, minval=-bound, maxval=bound)
    wih = u(ks[1], (3 * hidden, hidden))                                      # weight_ih_l0 (r, z, n)
    whh = u(ks[2], (3 * hidden, hidden))                                      # weight_hh_l0
    bih = u(ks[3], (1, 3 * hidden))
    bhh = u(ks[4], (1, 3 * hidden))
    gru = {'wih_t': wih.T, 'whh_t': whh.T, 'bih': bih, 'bhh': bhh}            # pre-transposed
    return emb, gru


# ----------------------------- main -----------------------------

if __name__ == "__main__":
    key = jax.random.PRNGKey(0)
    vocab, hidden = 64, 32
    B, T = 2, 8

    kp, kq = jax.random.split(key)
    embedding, gru_params = init_params(kp, vocab, hidden)
    questions = jax.random.randint(kq, (B, T), 0, vocab, dtype=jnp.int32)

    fwd = jax.jit(question_module)
    out = fwd(questions, embedding, gru_params)
    jax.block_until_ready(out)
    assert out.shape == (B, 1, hidden) and out.dtype == jnp.float32

    # correctness vs pure-f32 JAX reference (loose tolerance: bf16 MXU operands)
    ref = question_module_ref(questions, embedding, gru_params)
    max_err = float(jnp.max(jnp.abs(out - ref)))
    assert max_err < 1e-1, f"max abs error vs f32 reference: {max_err}"

    print("KERNEL_OK")
</pallas_src>

<mosaic_0001>
module attributes {stable_mosaic.version = 11 : i64} {
  func.func @question_gru_kernel(%arg0: i32, %arg1: memref<16x32xf32, #tpu.memory_space<vmem>>, %arg2: memref<32x96xf32, #tpu.memory_space<vmem>>, %arg3: memref<32x96xf32, #tpu.memory_space<vmem>>, %arg4: memref<1x96xf32, #tpu.memory_space<vmem>>, %arg5: memref<1x96xf32, #tpu.memory_space<vmem>>, %arg6: memref<2x32xf32, #tpu.memory_space<vmem>>) attributes {dimension_semantics = [#tpu.dimension_semantics<arbitrary>], iteration_bounds = array<i64: 1>, scalar_prefetch = 0 : i64, scratch_operands = 0 : i64, tpu.core_type = #tpu.core_type<tc>, window_params = [{pipeline_mode = #tpu.pipeline_mode<synchronous>, transform_indices = @transform_0, window_bounds = array<i64: 16, 32>}, {pipeline_mode = #tpu.pipeline_mode<synchronous>, transform_indices = @transform_1, window_bounds = array<i64: 32, 96>}, {pipeline_mode = #tpu.pipeline_mode<synchronous>, transform_indices = @transform_2, window_bounds = array<i64: 32, 96>}, {pipeline_mode = #tpu.pipeline_mode<synchronous>, transform_indices = @transform_3, window_bounds = array<i64: 1, 96>}, {pipeline_mode = #tpu.pipeline_mode<synchronous>, transform_indices = @transform_4, window_bounds = array<i64: 1, 96>}, {pipeline_mode = #tpu.pipeline_mode<synchronous>, transform_indices = @transform_5, window_bounds = array<i64: 2, 32>}]} {
    %c0 = arith.constant 0 : index
    %c0_0 = arith.constant 0 : index
    %0 = vector.load %arg1[%c0, %c0_0] : memref<16x32xf32, #tpu.memory_space<vmem>>, vector<16x32xf32>
    %1 = arith.truncf %0 : vector<16x32xf32> to vector<16x32xbf16>
    %c0_1 = arith.constant 0 : index
    %c0_2 = arith.constant 0 : index
    %2 = vector.load %arg2[%c0_1, %c0_2] : memref<32x96xf32, #tpu.memory_space<vmem>>, vector<32x96xf32>
    %3 = arith.truncf %2 : vector<32x96xf32> to vector<32x96xbf16>
    %cst = arith.constant dense<0.000000e+00> : vector<16x96xf32>
    %4 = tpu.matmul %1, %3, %cst {dimension_numbers = #tpu.dot_dimension_numbers<[1], [0], [0], [1], [0, 0, 1, 1], [], []>} : vector<16x32xbf16>, vector<32x96xbf16>, vector<16x96xf32> -> vector<16x96xf32>
    %c0_3 = arith.constant 0 : index
    %c0_4 = arith.constant 0 : index
    %5 = vector.load %arg4[%c0_3, %c0_4] : memref<1x96xf32, #tpu.memory_space<vmem>>, vector<1x96xf32>
    %6 = vector.broadcast %5 : vector<1x96xf32> to vector<16x96xf32>
    %7 = arith.addf %4, %6 : vector<16x96xf32>
    %c0_5 = arith.constant 0 : index
    %c0_6 = arith.constant 0 : index
    %8 = vector.load %arg3[%c0_5, %c0_6] : memref<32x96xf32, #tpu.memory_space<vmem>>, vector<32x96xf32>
    %9 = arith.truncf %8 : vector<32x96xf32> to vector<32x96xbf16>
    %c0_7 = arith.constant 0 : index
    %c0_8 = arith.constant 0 : index
    %10 = vector.load %arg5[%c0_7, %c0_8] : memref<1x96xf32, #tpu.memory_space<vmem>>, vector<1x96xf32>
    %cst_9 = arith.constant 0.000000e+00 : f32
    %11 = vector.broadcast %cst_9 : f32 to vector<2x32xf32>
    %12 = vector.extract_strided_slice %7 {offsets = [0, 0], sizes = [2, 96], strides = [1, 1]} : vector<16x96xf32> to vector<2x96xf32>
    %13 = arith.truncf %11 : vector<2x32xf32> to vector<2x32xbf16>
    %cst_10 = arith.constant dense<0.000000e+00> : vector<2x96xf32>
    %14 = tpu.matmul %13, %9, %cst_10 {dimension_numbers = #tpu.dot_dimension_numbers<[1], [0], [0], [1], [0, 0, 1, 1], [], []>} : vector<2x32xbf16>, vector<32x96xbf16>, vector<2x96xf32> -> vector<2x96xf32>
    %15 = vector.broadcast %10 : vector<1x96xf32> to vector<2x96xf32>
    %16 = arith.addf %14, %15 : vector<2x96xf32>
    %17 = vector.extract_strided_slice %12 {offsets = [0, 0], sizes = [2, 32], strides = [1, 1]} : vector<2x96xf32> to vector<2x32xf32>
    %18 = vector.extract_strided_slice %16 {offsets = [0, 0], sizes = [2, 32], strides = [1, 1]} : vector<2x96xf32> to vector<2x32xf32>
    %19 = arith.addf %17, %18 : vector<2x32xf32>
    %20 = arith.negf %19 : vector<2x32xf32>
    %21 = math.exp %20 : vector<2x32xf32>
    %cst_11 = arith.constant 1.000000e+00 : f32
    %22 = vector.broadcast %cst_11 : f32 to vector<2x32xf32>
    %23 = arith.addf %22, %21 : vector<2x32xf32>
    %24 = arith.divf %22, %23 : vector<2x32xf32>
    %25 = vector.extract_strided_slice %12 {offsets = [0, 32], sizes = [2, 32], strides = [1, 1]} : vector<2x96xf32> to vector<2x32xf32>
    %26 = vector.extract_strided_slice %16 {offsets = [0, 32], sizes = [2, 32], strides = [1, 1]} : vector<2x96xf32> to vector<2x32xf32>
    %27 = arith.addf %25, %26 : vector<2x32xf32>
    %28 = arith.negf %27 : vector<2x32xf32>
    %29 = math.exp %28 : vector<2x32xf32>
    %cst_12 = arith.constant 1.000000e+00 : f32
    %30 = vector.broadcast %cst_12 : f32 to vector<2x32xf32>
    %31 = arith.addf %30, %29 : vector<2x32xf32>
    %32 = arith.divf %30, %31 : vector<2x32xf32>
    %33 = vector.extract_strided_slice %12 {offsets = [0, 64], sizes = [2, 32], strides = [1, 1]} : vector<2x96xf32> to vector<2x32xf32>
    %34 = vector.extract_strided_slice %16 {offsets = [0, 64], sizes = [2, 32], strides = [1, 1]} : vector<2x96xf32> to vector<2x32xf32>
    %35 = arith.mulf %24, %34 : vector<2x32xf32>
    %36 = arith.addf %33, %35 : vector<2x32xf32>
    %37 = math.tanh %36 : vector<2x32xf32>
    %cst_13 = arith.constant 1.000000e+00 : f32
    %38 = vector.broadcast %cst_13 : f32 to vector<2x32xf32>
    %39 = arith.subf %38, %32 : vector<2x32xf32>
    %40 = arith.mulf %39, %37 : vector<2x32xf32>
    %41 = arith.mulf %32, %11 : vector<2x32xf32>
    %42 = arith.addf %40, %41 : vector<2x32xf32>
    %43 = vector.extract_strided_slice %7 {offsets = [2, 0], sizes = [2, 96], strides = [1, 1]} : vector<16x96xf32> to vector<2x96xf32>
    %44 = arith.truncf %42 : vector<2x32xf32> to vector<2x32xbf16>
    %cst_14 = arith.constant dense<0.000000e+00> : vector<2x96xf32>
    %45 = tpu.matmul %44, %9, %cst_14 {dimension_numbers = #tpu.dot_dimension_numbers<[1], [0], [0], [1], [0, 0, 1, 1], [], []>} : vector<2x32xbf16>, vector<32x96xbf16>, vector<2x96xf32> -> vector<2x96xf32>
    %46 = vector.broadcast %10 : vector<1x96xf32> to vector<2x96xf32>
    %47 = arith.addf %45, %46 : vector<2x96xf32>
    %48 = vector.extract_strided_slice %43 {offsets = [0, 0], sizes = [2, 32], strides = [1, 1]} : vector<2x96xf32> to vector<2x32xf32>
    %49 = vector.extract_strided_slice %47 {offsets = [0, 0], sizes = [2, 32], strides = [1, 1]} : vector<2x96xf32> to vector<2x32xf32>
    %50 = arith.addf %48, %49 : vector<2x32xf32>
    %51 = arith.negf %50 : vector<2x32xf32>
    %52 = math.exp %51 : vector<2x32xf32>
    %cst_15 = arith.constant 1.000000e+00 : f32
    %53 = vector.broadcast %cst_15 : f32 to vector<2x32xf32>
    %54 = arith.addf %53, %52 : vector<2x32xf32>
    %55 = arith.divf %53, %54 : vector<2x32xf32>
    %56 = vector.extract_strided_slice %43 {offsets = [0, 32], sizes = [2, 32], strides = [1, 1]} : vector<2x96xf32> to vector<2x32xf32>
    %57 = vector.extract_strided_slice %47 {offsets = [0, 32], sizes = [2, 32], strides = [1, 1]} : vector<2x96xf32> to vector<2x32xf32>
    %58 = arith.addf %56, %57 : vector<2x32xf32>
    %59 = arith.negf %58 : vector<2x32xf32>
    %60 = math.exp %59 : vector<2x32xf32>
    %cst_16 = arith.constant 1.000000e+00 : f32
    %61 = vector.broadcast %cst_16 : f32 to vector<2x32xf32>
    %62 = arith.addf %61, %60 : vector<2x32xf32>
    %63 = arith.divf %61, %62 : vector<2x32xf32>
    %64 = vector.extract_strided_slice %43 {offsets = [0, 64], sizes = [2, 32], strides = [1, 1]} : vector<2x96xf32> to vector<2x32xf32>
    %65 = vector.extract_strided_slice %47 {offsets = [0, 64], sizes = [2, 32], strides = [1, 1]} : vector<2x96xf32> to vector<2x32xf32>
    %66 = arith.mulf %55, %65 : vector<2x32xf32>
    %67 = arith.addf %64, %66 : vector<2x32xf32>
    %68 = math.tanh %67 : vector<2x32xf32>
    %cst_17 = arith.constant 1.000000e+00 : f32
    %69 = vector.broadcast %cst_17 : f32 to vector<2x32xf32>
    %70 = arith.subf %69, %63 : vector<2x32xf32>
    %71 = arith.mulf %70, %68 : vector<2x32xf32>
    %72 = arith.mulf %63, %42 : vector<2x32xf32>
    %73 = arith.addf %71, %72 : vector<2x32xf32>
    %74 = vector.extract_strided_slice %7 {offsets = [4, 0], sizes = [2, 96], strides = [1, 1]} : vector<16x96xf32> to vector<2x96xf32>
    %75 = arith.truncf %73 : vector<2x32xf32> to vector<2x32xbf16>
    %cst_18 = arith.constant dense<0.000000e+00> : vector<2x96xf32>
    %76 = tpu.matmul %75, %9, %cst_18 {dimension_numbers = #tpu.dot_dimension_numbers<[1], [0], [0], [1], [0, 0, 1, 1], [], []>} : vector<2x32xbf16>, vector<32x96xbf16>, vector<2x96xf32> -> vector<2x96xf32>
    %77 = vector.broadcast %10 : vector<1x96xf32> to vector<2x96xf32>
    %78 = arith.addf %76, %77 : vector<2x96xf32>
    %79 = vector.extract_strided_slice %74 {offsets = [0, 0], sizes = [2, 32], strides = [1, 1]} : vector<2x96xf32> to vector<2x32xf32>
    %80 = vector.extract_strided_slice %78 {offsets = [0, 0], sizes = [2, 32], strides = [1, 1]} : vector<2x96xf32> to vector<2x32xf32>
    %81 = arith.addf %79, %80 : vector<2x32xf32>
    %82 = arith.negf %81 : vector<2x32xf32>
    %83 = math.exp %82 : vector<2x32xf32>
    %cst_19 = arith.constant 1.000000e+00 : f32
    %84 = vector.broadcast %cst_19 : f32 to vector<2x32xf32>
    %85 = arith.addf %84, %83 : vector<2x32xf32>
    %86 = arith.divf %84, %85 : vector<2x32xf32>
    %87 = vector.extract_strided_slice %74 {offsets = [0, 32], sizes = [2, 32], strides = [1, 1]} : vector<2x96xf32> to vector<2x32xf32>
    %88 = vector.extract_strided_slice %78 {offsets = [0, 32], sizes = [2, 32], strides = [1, 1]} : vector<2x96xf32> to vector<2x32xf32>
    %89 = arith.addf %87, %88 : vector<2x32xf32>
    %90 = arith.negf %89 : vector<2x32xf32>
    %91 = math.exp %90 : vector<2x32xf32>
    %cst_20 = arith.constant 1.000000e+00 : f32
    %92 = vector.broadcast %cst_20 : f32 to vector<2x32xf32>
    %93 = arith.addf %92, %91 : vector<2x32xf32>
    %94 = arith.divf %92, %93 : vector<2x32xf32>
    %95 = vector.extract_strided_slice %74 {offsets = [0, 64], sizes = [2, 32], strides = [1, 1]} : vector<2x96xf32> to vector<2x32xf32>
    %96 = vector.extract_strided_slice %78 {offsets = [0, 64], sizes = [2, 32], strides = [1, 1]} : vector<2x96xf32> to vector<2x32xf32>
    %97 = arith.mulf %86, %96 : vector<2x32xf32>
    %98 = arith.addf %95, %97 : vector<2x32xf32>
    %99 = math.tanh %98 : vector<2x32xf32>
    %cst_21 = arith.constant 1.000000e+00 : f32
    %100 = vector.broadcast %cst_21 : f32 to vector<2x32xf32>
    %101 = arith.subf %100, %94 : vector<2x32xf32>
    %102 = arith.mulf %101, %99 : vector<2x32xf32>
    %103 = arith.mulf %94, %73 : vector<2x32xf32>
    %104 = arith.addf %102, %103 : vector<2x32xf32>
    %105 = vector.extract_strided_slice %7 {offsets = [6, 0], sizes = [2, 96], strides = [1, 1]} : vector<16x96xf32> to vector<2x96xf32>
    %106 = arith.truncf %104 : vector<2x32xf32> to vector<2x32xbf16>
    %cst_22 = arith.constant dense<0.000000e+00> : vector<2x96xf32>
    %107 = tpu.matmul %106, %9, %cst_22 {dimension_numbers = #tpu.dot_dimension_numbers<[1], [0], [0], [1], [0, 0, 1, 1], [], []>} : vector<2x32xbf16>, vector<32x96xbf16>, vector<2x96xf32> -> vector<2x96xf32>
    %108 = vector.broadcast %10 : vector<1x96xf32> to vector<2x96xf32>
    %109 = arith.addf %107, %108 : vector<2x96xf32>
    %110 = vector.extract_strided_slice %105 {offsets = [0, 0], sizes = [2, 32], strides = [1, 1]} : vector<2x96xf32> to vector<2x32xf32>
    %111 = vector.extract_strided_slice %109 {offsets = [0, 0], sizes = [2, 32], strides = [1, 1]} : vector<2x96xf32> to vector<2x32xf32>
    %112 = arith.addf %110, %111 : vector<2x32xf32>
    %113 = arith.negf %112 : vector<2x32xf32>
    %114 = math.exp %113 : vector<2x32xf32>
    %cst_23 = arith.constant 1.000000e+00 : f32
    %115 = vector.broadcast %cst_23 : f32 to vector<2x32xf32>
    %116 = arith.addf %115, %114 : vector<2x32xf32>
    %117 = arith.divf %115, %116 : vector<2x32xf32>
    %118 = vector.extract_strided_slice %105 {offsets = [0, 32], sizes = [2, 32], strides = [1, 1]} : vector<2x96xf32> to vector<2x32xf32>
    %119 = vector.extract_strided_slice %109 {offsets = [0, 32], sizes = [2, 32], strides = [1, 1]} : vector<2x96xf32> to vector<2x32xf32>
    %120 = arith.addf %118, %119 : vector<2x32xf32>
    %121 = arith.negf %120 : vector<2x32xf32>
    %122 = math.exp %121 : vector<2x32xf32>
    %cst_24 = arith.constant 1.000000e+00 : f32
    %123 = vector.broadcast %cst_24 : f32 to vector<2x32xf32>
    %124 = arith.addf %123, %122 : vector<2x32xf32>
    %125 = arith.divf %123, %124 : vector<2x32xf32>
    %126 = vector.extract_strided_slice %105 {offsets = [0, 64], sizes = [2, 32], strides = [1, 1]} : vector<2x96xf32> to vector<2x32xf32>
    %127 = vector.extract_strided_slice %109 {offsets = [0, 64], sizes = [2, 32], strides = [1, 1]} : vector<2x96xf32> to vector<2x32xf32>
    %128 = arith.mulf %117, %127 : vector<2x32xf32>
    %129 = arith.addf %126, %128 : vector<2x32xf32>
    %130 = math.tanh %129 : vector<2x32xf32>
    %cst_25 = arith.constant 1.000000e+00 : f32
    %131 = vector.broadcast %cst_25 : f32 to vector<2x32xf32>
    %132 = arith.subf %131, %125 : vector<2x32xf32>
    %133 = arith.mulf %132, %130 : vector<2x32xf32>
    %134 = arith.mulf %125, %104 : vector<2x32xf32>
    %135 = arith.addf %133, %134 : vector<2x32xf32>
    %136 = vector.extract_strided_slice %7 {offsets = [8, 0], sizes = [2, 96], strides = [1, 1]} : vector<16x96xf32> to vector<2x96xf32>
    %137 = arith.truncf %135 : vector<2x32xf32> to vector<2x32xbf16>
    %cst_26 = arith.constant dense<0.000000e+00> : vector<2x96xf32>
    %138 = tpu.matmul %137, %9, %cst_26 {dimension_numbers = #tpu.dot_dimension_numbers<[1], [0], [0], [1], [0, 0, 1, 1], [], []>} : vector<2x32xbf16>, vector<32x96xbf16>, vector<2x96xf32> -> vector<2x96xf32>
    %139 = vector.broadcast %10 : vector<1x96xf32> to vector<2x96xf32>
    %140 = arith.addf %138, %139 : vector<2x96xf32>
    %141 = vector.extract_strided_slice %136 {offsets = [0, 0], sizes = [2, 32], strides = [1, 1]} : vector<2x96xf32> to vector<2x32xf32>
    %142 = vector.extract_strided_slice %140 {offsets = [0, 0], sizes = [2, 32], strides = [1, 1]} : vector<2x96xf32> to vector<2x32xf32>
    %143 = arith.addf %141, %142 : vector<2x32xf32>
    %144 = arith.negf %143 : vector<2x32xf32>
    %145 = math.exp %144 : vector<2x32xf32>
    %cst_27 = arith.constant 1.000000e+00 : f32
    %146 = vector.broadcast %cst_27 : f32 to vector<2x32xf32>
    %147 = arith.addf %146, %145 : vector<2x32xf32>
    %148 = arith.divf %146, %147 : vector<2x32xf32>
    %149 = vector.extract_strided_slice %136 {offsets = [0, 32], sizes = [2, 32], strides = [1, 1]} : vector<2x96xf32> to vector<2x32xf32>
    %150 = vector.extract_strided_slice %140 {offsets = [0, 32], sizes = [2, 32], strides = [1, 1]} : vector<2x96xf32> to vector<2x32xf32>
    %151 = arith.addf %149, %150 : vector<2x32xf32>
    %152 = arith.negf %151 : vector<2x32xf32>
    %153 = math.exp %152 : vector<2x32xf32>
    %cst_28 = arith.constant 1.000000e+00 : f32
    %154 = vector.broadcast %cst_28 : f32 to vector<2x32xf32>
    %155 = arith.addf %154, %153 : vector<2x32xf32>
    %156 = arith.divf %154, %155 : vector<2x32xf32>
    %157 = vector.extract_strided_slice %136 {offsets = [0, 64], sizes = [2, 32], strides = [1, 1]} : vector<2x96xf32> to vector<2x32xf32>
    %158 = vector.extract_strided_slice %140 {offsets = [0, 64], sizes = [2, 32], strides = [1, 1]} : vector<2x96xf32> to vector<2x32xf32>
    %159 = arith.mulf %148, %158 : vector<2x32xf32>
    %160 = arith.addf %157, %159 : vector<2x32xf32>
    %161 = math.tanh %160 : vector<2x32xf32>
    %cst_29 = arith.constant 1.000000e+00 : f32
    %162 = vector.broadcast %cst_29 : f32 to vector<2x32xf32>
    %163 = arith.subf %162, %156 : vector<2x32xf32>
    %164 = arith.mulf %163, %161 : vector<2x32xf32>
    %165 = arith.mulf %156, %135 : vector<2x32xf32>
    %166 = arith.addf %164, %165 : vector<2x32xf32>
    %167 = vector.extract_strided_slice %7 {offsets = [10, 0], sizes = [2, 96], strides = [1, 1]} : vector<16x96xf32> to vector<2x96xf32>
    %168 = arith.truncf %166 : vector<2x32xf32> to vector<2x32xbf16>
    %cst_30 = arith.constant dense<0.000000e+00> : vector<2x96xf32>
    %169 = tpu.matmul %168, %9, %cst_30 {dimension_numbers = #tpu.dot_dimension_numbers<[1], [0], [0], [1], [0, 0, 1, 1], [], []>} : vector<2x32xbf16>, vector<32x96xbf16>, vector<2x96xf32> -> vector<2x96xf32>
    %170 = vector.broadcast %10 : vector<1x96xf32> to vector<2x96xf32>
    %171 = arith.addf %169, %170 : vector<2x96xf32>
    %172 = vector.extract_strided_slice %167 {offsets = [0, 0], sizes = [2, 32], strides = [1, 1]} : vector<2x96xf32> to vector<2x32xf32>
    %173 = vector.extract_strided_slice %171 {offsets = [0, 0], sizes = [2, 32], strides = [1, 1]} : vector<2x96xf32> to vector<2x32xf32>
    %174 = arith.addf %172, %173 : vector<2x32xf32>
    %175 = arith.negf %174 : vector<2x32xf32>
    %176 = math.exp %175 : vector<2x32xf32>
    %cst_31 = arith.constant 1.000000e+00 : f32
    %177 = vector.broadcast %cst_31 : f32 to vector<2x32xf32>
    %178 = arith.addf %177, %176 : vector<2x32xf32>
    %179 = arith.divf %177, %178 : vector<2x32xf32>
    %180 = vector.extract_strided_slice %167 {offsets = [0, 32], sizes = [2, 32], strides = [1, 1]} : vector<2x96xf32> to vector<2x32xf32>
    %181 = vector.extract_strided_slice %171 {offsets = [0, 32], sizes = [2, 32], strides = [1, 1]} : vector<2x96xf32> to vector<2x32xf32>
    %182 = arith.addf %180, %181 : vector<2x32xf32>
    %183 = arith.negf %182 : vector<2x32xf32>
    %184 = math.exp %183 : vector<2x32xf32>
    %cst_32 = arith.constant 1.000000e+00 : f32
    %185 = vector.broadcast %cst_32 : f32 to vector<2x32xf32>
    %186 = arith.addf %185, %184 : vector<2x32xf32>
    %187 = arith.divf %185, %186 : vector<2x32xf32>
    %188 = vector.extract_strided_slice %167 {offsets = [0, 64], sizes = [2, 32], strides = [1, 1]} : vector<2x96xf32> to vector<2x32xf32>
    %189 = vector.extract_strided_slice %171 {offsets = [0, 64], sizes = [2, 32], strides = [1, 1]} : vector<2x96xf32> to vector<2x32xf32>
    %190 = arith.mulf %179, %189 : vector<2x32xf32>
    %191 = arith.addf %188, %190 : vector<2x32xf32>
    %192 = math.tanh %191 : vector<2x32xf32>
    %cst_33 = arith.constant 1.000000e+00 : f32
    %193 = vector.broadcast %cst_33 : f32 to vector<2x32xf32>
    %194 = arith.subf %193, %187 : vector<2x32xf32>
    %195 = arith.mulf %194, %192 : vector<2x32xf32>
    %196 = arith.mulf %187, %166 : vector<2x32xf32>
    %197 = arith.addf %195, %196 : vector<2x32xf32>
    %198 = vector.extract_strided_slice %7 {offsets = [12, 0], sizes = [2, 96], strides = [1, 1]} : vector<16x96xf32> to vector<2x96xf32>
    %199 = arith.truncf %197 : vector<2x32xf32> to vector<2x32xbf16>
    %cst_34 = arith.constant dense<0.000000e+00> : vector<2x96xf32>
    %200 = tpu.matmul %199, %9, %cst_34 {dimension_numbers = #tpu.dot_dimension_numbers<[1], [0], [0], [1], [0, 0, 1, 1], [], []>} : vector<2x32xbf16>, vector<32x96xbf16>, vector<2x96xf32> -> vector<2x96xf32>
    %201 = vector.broadcast %10 : vector<1x96xf32> to vector<2x96xf32>
    %202 = arith.addf %200, %201 : vector<2x96xf32>
    %203 = vector.extract_strided_slice %198 {offsets = [0, 0], sizes = [2, 32], strides = [1, 1]} : vector<2x96xf32> to vector<2x32xf32>
    %204 = vector.extract_strided_slice %202 {offsets = [0, 0], sizes = [2, 32], strides = [1, 1]} : vector<2x96xf32> to vector<2x32xf32>
    %205 = arith.addf %203, %204 : vector<2x32xf32>
    %206 = arith.negf %205 : vector<2x32xf32>
    %207 = math.exp %206 : vector<2x32xf32>
    %cst_35 = arith.constant 1.000000e+00 : f32
    %208 = vector.broadcast %cst_35 : f32 to vector<2x32xf32>
    %209 = arith.addf %208, %207 : vector<2x32xf32>
    %210 = arith.divf %208, %209 : vector<2x32xf32>
    %211 = vector.extract_strided_slice %198 {offsets = [0, 32], sizes = [2, 32], strides = [1, 1]} : vector<2x96xf32> to vector<2x32xf32>
    %212 = vector.extract_strided_slice %202 {offsets = [0, 32], sizes = [2, 32], strides = [1, 1]} : vector<2x96xf32> to vector<2x32xf32>
    %213 = arith.addf %211, %212 : vector<2x32xf32>
    %214 = arith.negf %213 : vector<2x32xf32>
    %215 = math.exp %214 : vector<2x32xf32>
    %cst_36 = arith.constant 1.000000e+00 : f32
    %216 = vector.broadcast %cst_36 : f32 to vector<2x32xf32>
    %217 = arith.addf %216, %215 : vector<2x32xf32>
    %218 = arith.divf %216, %217 : vector<2x32xf32>
    %219 = vector.extract_strided_slice %198 {offsets = [0, 64], sizes = [2, 32], strides = [1, 1]} : vector<2x96xf32> to vector<2x32xf32>
    %220 = vector.extract_strided_slice %202 {offsets = [0, 64], sizes = [2, 32], strides = [1, 1]} : vector<2x96xf32> to vector<2x32xf32>
    %221 = arith.mulf %210, %220 : vector<2x32xf32>
    %222 = arith.addf %219, %221 : vector<2x32xf32>
    %223 = math.tanh %222 : vector<2x32xf32>
    %cst_37 = arith.constant 1.000000e+00 : f32
    %224 = vector.broadcast %cst_37 : f32 to vector<2x32xf32>
    %225 = arith.subf %224, %218 : vector<2x32xf32>
    %226 = arith.mulf %225, %223 : vector<2x32xf32>
    %227 = arith.mulf %218, %197 : vector<2x32xf32>
    %228 = arith.addf %226, %227 : vector<2x32xf32>
    %229 = vector.extract_strided_slice %7 {offsets = [14, 0], sizes = [2, 96], strides = [1, 1]} : vector<16x96xf32> to vector<2x96xf32>
    %230 = arith.truncf %228 : vector<2x32xf32> to vector<2x32xbf16>
    %cst_38 = arith.constant dense<0.000000e+00> : vector<2x96xf32>
    %231 = tpu.matmul %230, %9, %cst_38 {dimension_numbers = #tpu.dot_dimension_numbers<[1], [0], [0], [1], [0, 0, 1, 1], [], []>} : vector<2x32xbf16>, vector<32x96xbf16>, vector<2x96xf32> -> vector<2x96xf32>
    %232 = vector.broadcast %10 : vector<1x96xf32> to vector<2x96xf32>
    %233 = arith.addf %231, %232 : vector<2x96xf32>
    %234 = vector.extract_strided_slice %229 {offsets = [0, 0], sizes = [2, 32], strides = [1, 1]} : vector<2x96xf32> to vector<2x32xf32>
    %235 = vector.extract_strided_slice %233 {offsets = [0, 0], sizes = [2, 32], strides = [1, 1]} : vector<2x96xf32> to vector<2x32xf32>
    %236 = arith.addf %234, %235 : vector<2x32xf32>
    %237 = arith.negf %236 : vector<2x32xf32>
    %238 = math.exp %237 : vector<2x32xf32>
    %cst_39 = arith.constant 1.000000e+00 : f32
    %239 = vector.broadcast %cst_39 : f32 to vector<2x32xf32>
    %240 = arith.addf %239, %238 : vector<2x32xf32>
    %241 = arith.divf %239, %240 : vector<2x32xf32>
    %242 = vector.extract_strided_slice %229 {offsets = [0, 32], sizes = [2, 32], strides = [1, 1]} : vector<2x96xf32> to vector<2x32xf32>
    %243 = vector.extract_strided_slice %233 {offsets = [0, 32], sizes = [2, 32], strides = [1, 1]} : vector<2x96xf32> to vector<2x32xf32>
    %244 = arith.addf %242, %243 : vector<2x32xf32>
    %245 = arith.negf %244 : vector<2x32xf32>
    %246 = math.exp %245 : vector<2x32xf32>
    %cst_40 = arith.constant 1.000000e+00 : f32
    %247 = vector.broadcast %cst_40 : f32 to vector<2x32xf32>
    %248 = arith.addf %247, %246 : vector<2x32xf32>
    %249 = arith.divf %247, %248 : vector<2x32xf32>
    %250 = vector.extract_strided_slice %229 {offsets = [0, 64], sizes = [2, 32], strides = [1, 1]} : vector<2x96xf32> to vector<2x32xf32>
    %251 = vector.extract_strided_slice %233 {offsets = [0, 64], sizes = [2, 32], strides = [1, 1]} : vector<2x96xf32> to vector<2x32xf32>
    %252 = arith.mulf %241, %251 : vector<2x32xf32>
    %253 = arith.addf %250, %252 : vector<2x32xf32>
    %254 = math.tanh %253 : vector<2x32xf32>
    %cst_41 = arith.constant 1.000000e+00 : f32
    %255 = vector.broadcast %cst_41 : f32 to vector<2x32xf32>
    %256 = arith.subf %255, %249 : vector<2x32xf32>
    %257 = arith.mulf %256, %254 : vector<2x32xf32>
    %258 = arith.mulf %249, %228 : vector<2x32xf32>
    %259 = arith.addf %257, %258 : vector<2x32xf32>
    %c0_42 = arith.constant 0 : index
    %c0_43 = arith.constant 0 : index
    %260 = vector.load %arg6[%c0_42, %c0_43] : memref<2x32xf32, #tpu.memory_space<vmem>>, vector<2x32xf32>
    tpu.vector_store %arg6[%c0_42, %c0_43], %259 {strides = array<i32>} : memref<2x32xf32, #tpu.memory_space<vmem>>, vector<2x32xf32>,
    return
  }
  func.func @transform_0(%arg0: i32) -> (i32, i32) {
    %c0_i32 = arith.constant 0 : i32
    %c0_i32_0 = arith.constant 0 : i32
    %c0_i32_1 = arith.constant 0 : i32
    return %c0_i32, %c0_i32_0 : i32, i32
  }
  func.func @transform_1(%arg0: i32) -> (i32, i32) {
    %c0_i32 = arith.constant 0 : i32
    %c0_i32_0 = arith.constant 0 : i32
    %c0_i32_1 = arith.constant 0 : i32
    return %c0_i32, %c0_i32_0 : i32, i32
  }
  func.func @transform_2(%arg0: i32) -> (i32, i32) {
    %c0_i32 = arith.constant 0 : i32
    %c0_i32_0 = arith.constant 0 : i32
    %c0_i32_1 = arith.constant 0 : i32
    return %c0_i32, %c0_i32_0 : i32, i32
  }
  func.func @transform_3(%arg0: i32) -> (i32, i32) {
    %c0_i32 = arith.constant 0 : i32
    %c0_i32_0 = arith.constant 0 : i32
    %c0_i32_1 = arith.constant 0 : i32
    return %c0_i32, %c0_i32_0 : i32, i32
  }
  func.func @transform_4(%arg0: i32) -> (i32, i32) {
    %c0_i32 = arith.constant 0 : i32
    %c0_i32_0 = arith.constant 0 : i32
    %c0_i32_1 = arith.constant 0 : i32
    return %c0_i32, %c0_i32_0 : i32, i32
  }
  func.func @transform_5(%arg0: i32) -> (i32, i32) {
    %c0_i32 = arith.constant 0 : i32
    %c0_i32_0 = arith.constant 0 : i32
    %c0_i32_1 = arith.constant 0 : i32
    return %c0_i32, %c0_i32_0 : i32, i32
  }
}

</mosaic_0001>

<llo_original>
// kernel: question_module.1
$region0: #{question_module.1}
  #allocation0 [shape = 'u32[]', space=smem, size = 0x4, offset = 0x4, fixed_abs, tag = 'smem constant byte address 0x4 - core index']
  #allocation1 [shape = 'u32[144,128]{1,0:T(1,128)}', space=vmem, size = 0x12000, scoped, tag = 'internal scratch']
  %s0 = inlined_call_operand.vmem [shape: f32[16,32], index: 0, kind: input, shape index: {}]
  %s1 = inlined_call_operand.vmem [shape: f32[32,96], index: 1, kind: input, shape index: {}]
  %s2 = inlined_call_operand.vmem [shape: f32[32,96], index: 2, kind: input, shape index: {}]
  %s3 = inlined_call_operand.vmem [shape: f32[1,96], index: 3, kind: input, shape index: {}]
  %s4 = inlined_call_operand.vmem [shape: f32[1,96], index: 4, kind: input, shape index: {}]
  %s5 = inlined_call_operand.hbm [shape: f32[2,32], index: 5, kind: output, shape index: {}]
  %s6 = sld [smem:[#allocation0]]
  $region30: #{question_module.1} parent=0
    _
  %s8 = ssub.s32 1, %s6
  %s9 = scalar_select 0, %s8, %s6
  $region1: #{question_module.1} parent=0
    #allocation2 [shape = 'u8[1024]{0}', space=vmem, size = 0x400, scoped, tag = 'output window, operand 0, single buffered']
    #allocation3 [shape = 's32[1]{0}', space=sflag, size = 0x4, scoped, tag = 'scoped memory for question_module.1']
    %10 = vsyncpa [#allocation3], 0
    // Predicated region
    $region2: #{question_module.1} parent=1 // pred_check
      _
    $region3: #{question_module.1} parent=1 // pred_check_branch
      %12 = sbr.rel (0) target = $region5
    $region4: #{question_module.1} parent=1 // pred_region
      _
    $region5: #{question_module.1} parent=1 // pred_fallthru
      _
    // Predicated region
    $region6: #{question_module.1} parent=1 // pred_check
      _
    $region7: #{question_module.1} parent=1 // pred_check_branch
      %14 = sbr.rel (0) target = $region9
    $region8: #{question_module.1} parent=1 // pred_region
      _
    $region9: #{question_module.1} parent=1 // pred_fallthru
      _
    // Predicated region
    $region10: #{question_module.1} parent=1 // pred_check
      _
    $region11: #{question_module.1} parent=1 // pred_check_branch
      %16 = sbr.rel (0) target = $region13
    $region12: #{question_module.1} parent=1 // pred_region
      _
    $region13: #{question_module.1} parent=1 // pred_fallthru
      _
    // Predicated region
    $region14: #{question_module.1} parent=1 // pred_check
      _
    $region15: #{question_module.1} parent=1 // pred_check_branch
      %18 = sbr.rel (0) target = $region17
    $region16: #{question_module.1} parent=1 // pred_region
      _
    $region17: #{question_module.1} parent=1 // pred_fallthru
      _
    // Predicated region
    $region18: #{question_module.1} parent=1 // pred_check
      _
    $region19: #{question_module.1} parent=1 // pred_check_branch
      %20 = sbr.rel (0) target = $region21
    $region20: #{question_module.1} parent=1 // pred_region
      _
    $region21: #{question_module.1} parent=1 // pred_fallthru
      _
    %v22 = vld [vmem:[%s0] sm:$0xff]
    %v23 = vld [vmem:[%s0 + $0x8] sm:$0xff]
    %v24 = vpack.c.bf16 %v23, %v22
    %v25 = vld [vmem:[%s1] sm:$0xff]
    %v26 = vld [vmem:[%s1 + $0x8] sm:$0xff]
    %v27 = vld [vmem:[%s1 + $0x10] sm:$0xff]
    %v28 = vld [vmem:[%s1 + $0x18] sm:$0xff]
    %v29 = vpack.c.bf16 %v26, %v25
    %v30 = vpack.c.bf16 %v28, %v27
    %v31 = vld [vmem:[%s3] sm:$0x1]
    %v33 = vlaneseq
    %v34 = vshrl.u32 %v33, 7
    %v35 = vsub.s32 0, %v34
    %v36 = vrot.slane %v31, %v35
    %vm38 = vcmask 261120
    %v40 = vsel %vm38, %v24, 0
    %42 = vmatprep.subr.bf16.mxu0 0
    %43 = vmatpush1.bf16.msra.mxu0 %v29
    %44 = vmatprep.subr.bf16.mxu0 0
    %45 = vmatpush1.bf16.msra.mxu0 %v30
    %46 = vmatprep.subr.bf16.mxu0 0
    %47 = vmatpush1.bf16.msra.mxu0 0
    %48 = vmatprep.subr.bf16.mxu0 0
    %49 = vmatpush1.bf16.msra.mxu0 0
    %50 = vmatprep.subr.bf16.mxu0 0
    %51 = vmatpush1.bf16.msra.mxu0 0
    %52 = vmatprep.subr.bf16.mxu0 0
    %53 = vmatpush1.bf16.msra.mxu0 0
    %54 = vmatprep.subr.bf16.mxu0 0
    %55 = vmatpush1.bf16.msra.mxu0 0
    %56 = vmatprep.subr.bf16.mxu0 0
    %57 = vmatpush1.bf16.msra.mxu0 0
    %58 = vmatprep.subr.bf16.mxu0 0
    %59 = vmatpush1.bf16.msra.mxu0 0
    %60 = vmatprep.subr.bf16.mxu0 0
    %61 = vmatpush1.bf16.msra.mxu0 0
    %62 = vmatprep.subr.bf16.mxu0 0
    %63 = vmatpush1.bf16.msra.mxu0 0
    %64 = vmatprep.subr.bf16.mxu0 0
    %65 = vmatpush1.bf16.msra.mxu0 0
    %66 = vmatprep.subr.bf16.mxu0 0
    %67 = vmatpush1.bf16.msra.mxu0 0
    %68 = vmatprep.subr.bf16.mxu0 0
    %69 = vmatpush1.bf16.msra.mxu0 0
    %70 = vmatprep.subr.bf16.mxu0 0
    %71 = vmatpush1.bf16.msra.mxu0 0
    %72 = vmatprep.subr.bf16.mxu0 0
    %73 = vmatpush1.bf16.msra.mxu0 0
    %74 = vmatprep.mubr.bf16.mxu0 0
    %75 = vmatmul.mubr.bf16.gmra.mrb[0].mxu0 %v40
    %v76 = vpop.f32.mrb[0].mxu0
    %v77 = vadd.f32 %v36, %v76
    %v78 = vpop.f32.mrb[0].mxu0
    %v79 = vpop.f32.mrb[0].mxu0
    %v80 = vadd.f32 %v36, %v79
    %v81 = vpop.f32.mrb[0].mxu0
    %82 = vdwg.mxu0
    %v83 = vld [vmem:[%s2] sm:$0xff]
    %v84 = vld [vmem:[%s2 + $0x8] sm:$0xff]
    %v85 = vld [vmem:[%s2 + $0x10] sm:$0xff]
    %v86 = vld [vmem:[%s2 + $0x18] sm:$0xff]
    %v87 = vpack.c.bf16 %v84, %v83
    %v88 = vpack.c.bf16 %v86, %v85
    %v89 = vld [vmem:[%s4] sm:$0x1]
    %v91 = vlaneseq
    %v92 = vshrl.u32 %v91, 7
    %v93 = vsub.s32 0, %v92
    %v94 = vrot.slane %v89, %v93
    %v97 = vsel %vm38, 0, 0
    %99 = vmatprep.subr.bf16.mxu0 0
    %100 = vmatpush1.bf16.msra.mxu0 %v87
    %101 = vmatprep.subr.bf16.mxu0 0
    %102 = vmatpush1.bf16.msra.mxu0 %v88
    %103 = vmatprep.subr.bf16.mxu0 0
    %104 = vmatpush1.bf16.msra.mxu0 0
    %105 = vmatprep.subr.bf16.mxu0 0
    %106 = vmatpush1.bf16.msra.mxu0 0
    %107 = vmatprep.subr.bf16.mxu0 0
    %108 = vmatpush1.bf16.msra.mxu0 0
    %109 = vmatprep.subr.bf16.mxu0 0
    %110 = vmatpush1.bf16.msra.mxu0 0
    %111 = vmatprep.subr.bf16.mxu0 0
    %112 = vmatpush1.bf16.msra.mxu0 0
    %113 = vmatprep.subr.bf16.mxu0 0
    %114 = vmatpush1.bf16.msra.mxu0 0
    %115 = vmatprep.subr.bf16.mxu0 0
    %116 = vmatpush1.bf16.msra.mxu0 0
    %117 = vmatprep.subr.bf16.mxu0 0
    %118 = vmatpush1.bf16.msra.mxu0 0
    %119 = vmatprep.subr.bf16.mxu0 0
    %120 = vmatpush1.bf16.msra.mxu0 0
    %121 = vmatprep.subr.bf16.mxu0 0
    %122 = vmatpush1.bf16.msra.mxu0 0
    %123 = vmatprep.subr.bf16.mxu0 0
    %124 = vmatpush1.bf16.msra.mxu0 0
    %125 = vmatprep.subr.bf16.mxu0 0
    %126 = vmatpush1.bf16.msra.mxu0 0
    %127 = vmatprep.subr.bf16.mxu0 0
    %128 = vmatpush1.bf16.msra.mxu0 0
    %129 = vmatprep.subr.bf16.mxu0 0
    %130 = vmatpush1.bf16.msra.mxu0 0
    %131 = vmatprep.mubr.bf16.mxu0 0
    %132 = vmatmul.mubr.bf16.gmra.mrb[0].mxu0 %v97
    %v133 = vpop.f32.mrb[0].mxu0
    %v134 = vadd.f32 %v94, %v133
    %v135 = vpop.f32.mrb[0].mxu0
    %v136 = vpop.f32.mrb[0].mxu0
    %v137 = vpop.f32.mrb[0].mxu0
    %138 = vdwg.mxu0
    %v139 = vadd.f32 %v77, %v134
    %v140 = vxor.u32 %v139, 2147483648
    %v141 = vmul.f32 %v140, 1.442695
    %v142 = vpow.pop %v141
    %v143 = vadd.f32 %v142, 1.0
    %v144 = vrcp.pop %v143
    %v145 = vmul.f32 1.0, %v144
    %147 = vrot.lane.b32.xlu0 %v134, 64
    %v148 = vpop.permute.xlu0 %147
    %v150 = vmul.f32 %v145, %v148
    %152 = vrot.lane.b32.xlu0 %v150, 64
    %v153 = vpop.permute.xlu0 %152
    %v155 = vadd.f32 %v77, %v153
    %v156 = vtanh.pop %v155
    %v157 = vsub.f32 1.0, %v145
    %159 = vrot.lane.b32.xlu0 %v156, 96
    %v160 = vpop.permute.xlu0 %159
    %v162 = vmul.f32 %v157, %v160
    %v163 = vmul.f32 %v145, 0.0
    %v164 = vadd.f32 %v162, %v163
    %v165 = vpack.c.bf16 %v164, %v164
    %167 = vrot.lane.b32.xlu0 %v165, 96
    %v168 = vpop.permute.xlu0 %167
    %v170 = vsel %vm38, %v168, 0
    %172 = vmatprep.subr.bf16.mxu0 0
    %173 = vmatpush1.bf16.msra.mxu0 %v87
    %174 = vmatprep.subr.bf16.mxu0 0
    %175 = vmatpush1.bf16.msra.mxu0 %v88
    %176 = vmatprep.subr.bf16.mxu0 0
    %177 = vmatpush1.bf16.msra.mxu0 0
    %178 = vmatprep.subr.bf16.mxu0 0
    %179 = vmatpush1.bf16.msra.mxu0 0
    %180 = vmatprep.subr.bf16.mxu0 0
    %181 = vmatpush1.bf16.msra.mxu0 0
    %182 = vmatprep.subr.bf16.mxu0 0
    %183 = vmatpush1.bf16.msra.mxu0 0
    %184 = vmatprep.subr.bf16.mxu0 0
    %185 = vmatpush1.bf16.msra.mxu0 0
    %186 = vmatprep.subr.bf16.mxu0 0
    %187 = vmatpush1.bf16.msra.mxu0 0
    %188 = vmatprep.subr.bf16.mxu0 0
    %189 = vmatpush1.bf16.msra.mxu0 0
    %190 = vmatprep.subr.bf16.mxu0 0
    %191 = vmatpush1.bf16.msra.mxu0 0
    %192 = vmatprep.subr.bf16.mxu0 0
    %193 = vmatpush1.bf16.msra.mxu0 0
    %194 = vmatprep.subr.bf16.mxu0 0
    %195 = vmatpush1.bf16.msra.mxu0 0
    %196 = vmatprep.subr.bf16.mxu0 0
    %197 = vmatpush1.bf16.msra.mxu0 0
    %198 = vmatprep.subr.bf16.mxu0 0
    %199 = vmatpush1.bf16.msra.mxu0 0
    %200 = vmatprep.subr.bf16.mxu0 0
    %201 = vmatpush1.bf16.msra.mxu0 0
    %202 = vmatprep.subr.bf16.mxu0 0
    %203 = vmatpush1.bf16.msra.mxu0 0
    %204 = vmatprep.mubr.bf16.mxu0 0
    %205 = vmatmul.mubr.bf16.gmra.mrb[0].mxu0 %v170
    %v206 = vpop.f32.mrb[0].mxu0
    %v207 = vadd.f32 %v94, %v206
    %v208 = vpop.f32.mrb[0].mxu0
    %v209 = vpop.f32.mrb[0].mxu0
    %v210 = vpop.f32.mrb[0].mxu0
    %211 = vdwg.mxu0
    %v213 = vrot.slane %v207, 6
    %v215 = vadd.f32 %v77, %v213
    %v216 = vxor.u32 %v215, 2147483648
    %v217 = vmul.f32 %v216, 1.442695
    %v218 = vpow.pop %v217
    %v219 = vadd.f32 %v218, 1.0
    %v220 = vrcp.pop %v219
    %v221 = vmul.f32 1.0, %v220
    %222 = vrot.lane.b32.xlu0 %v213, 64
    %v223 = vpop.permute.xlu0 %222
    %v225 = vmul.f32 %v221, %v223
    %227 = vrot.lane.b32.xlu0 %v225, 64
    %v228 = vpop.permute.xlu0 %227
    %v230 = vadd.f32 %v77, %v228
    %v231 = vtanh.pop %v230
    %v232 = vsub.f32 1.0, %v221
    %234 = vrot.lane.b32.xlu0 %v231, 96
    %v235 = vpop.permute.xlu0 %234
    %v237 = vmul.f32 %v232, %v235
    %v239 = vrot.slane %v164, 6
    %v241 = vmul.f32 %v221, %v239
    %v242 = vadd.f32 %v237, %v241
    %v243 = vpack.c.bf16 %v242, %v242
    %v245 = vrot.slane %v243, 1
    %246 = vrot.lane.b32.xlu0 %v245, 96
    %v247 = vpop.permute.xlu0 %246
    %v249 = vsel %vm38, %v247, 0
    %251 = vmatprep.subr.bf16.mxu0 0
    %252 = vmatpush1.bf16.msra.mxu0 %v87
    %253 = vmatprep.subr.bf16.mxu0 0
    %254 = vmatpush1.bf16.msra.mxu0 %v88
    %255 = vmatprep.subr.bf16.mxu0 0
    %256 = vmatpush1.bf16.msra.mxu0 0
    %257 = vmatprep.subr.bf16.mxu0 0
    %258 = vmatpush1.bf16.msra.mxu0 0
    %259 = vmatprep.subr.bf16.mxu0 0
    %260 = vmatpush1.bf16.msra.mxu0 0
    %261 = vmatprep.subr.bf16.mxu0 0
    %262 = vmatpush1.bf16.msra.mxu0 0
    %263 = vmatprep.subr.bf16.mxu0 0
    %264 = vmatpush1.bf16.msra.mxu0 0
    %265 = vmatprep.subr.bf16.mxu0 0
    %266 = vmatpush1.bf16.msra.mxu0 0
    %267 = vmatprep.subr.bf16.mxu0 0
    %268 = vmatpush1.bf16.msra.mxu0 0
    %269 = vmatprep.subr.bf16.mxu0 0
    %270 = vmatpush1.bf16.msra.mxu0 0
    %271 = vmatprep.subr.bf16.mxu0 0
    %272 = vmatpush1.bf16.msra.mxu0 0
    %273 = vmatprep.subr.bf16.mxu0 0
    %274 = vmatpush1.bf16.msra.mxu0 0
    %275 = vmatprep.subr.bf16.mxu0 0
    %276 = vmatpush1.bf16.msra.mxu0 0
    %277 = vmatprep.subr.bf16.mxu0 0
    %278 = vmatpush1.bf16.msra.mxu0 0
    %279 = vmatprep.subr.bf16.mxu0 0
    %280 = vmatpush1.bf16.msra.mxu0 0
    %281 = vmatprep.subr.bf16.mxu0 0
    %282 = vmatpush1.bf16.msra.mxu0 0
    %283 = vmatprep.mubr.bf16.mxu0 0
    %284 = vmatmul.mubr.bf16.gmra.mrb[0].mxu0 %v249
    %v285 = vpop.f32.mrb[0].mxu0
    %v286 = vadd.f32 %v94, %v285
    %v287 = vpop.f32.mrb[0].mxu0
    %v288 = vpop.f32.mrb[0].mxu0
    %v289 = vpop.f32.mrb[0].mxu0
    %290 = vdwg.mxu0
    %v292 = vrot.slane %v286, 4
    %v294 = vadd.f32 %v77, %v292
    %v295 = vxor.u32 %v294, 2147483648
    %v296 = vmul.f32 %v295, 1.442695
    %v297 = vpow.pop %v296
    %v298 = vadd.f32 %v297, 1.0
    %v299 = vrcp.pop %v298
    %v300 = vmul.f32 1.0, %v299
    %301 = vrot.lane.b32.xlu0 %v292, 64
    %v302 = vpop.permute.xlu0 %301
    %v304 = vmul.f32 %v300, %v302
    %306 = vrot.lane.b32.xlu0 %v304, 64
    %v307 = vpop.permute.xlu0 %306
    %v309 = vadd.f32 %v77, %v307
    %v310 = vtanh.pop %v309
    %v311 = vsub.f32 1.0, %v300
    %313 = vrot.lane.b32.xlu0 %v310, 96
    %v314 = vpop.permute.xlu0 %313
    %v316 = vmul.f32 %v311, %v314
    %v318 = vrot.slane %v242, 6
    %v320 = vmul.f32 %v300, %v318
    %v321 = vadd.f32 %v316, %v320
    %v322 = vpack.c.bf16 %v321, %v321
    %v324 = vrot.slane %v322, 2
    %325 = vrot.lane.b32.xlu0 %v324, 96
    %v326 = vpop.permute.xlu0 %325
    %v328 = vsel %vm38, %v326, 0
    %330 = vmatprep.subr.bf16.mxu0 0
    %331 = vmatpush1.bf16.msra.mxu0 %v87
    %332 = vmatprep.subr.bf16.mxu0 0
    %333 = vmatpush1.bf16.msra.mxu0 %v88
    %334 = vmatprep.subr.bf16.mxu0 0
    %335 = vmatpush1.bf16.msra.mxu0 0
    %336 = vmatprep.subr.bf16.mxu0 0
    %337 = vmatpush1.bf16.msra.mxu0 0
    %338 = vmatprep.subr.bf16.mxu0 0
    %339 = vmatpush1.bf16.msra.mxu0 0
    %340 = vmatprep.subr.bf16.mxu0 0
    %341 = vmatpush1.bf16.msra.mxu0 0
    %342 = vmatprep.subr.bf16.mxu0 0
    %343 = vmatpush1.bf16.msra.mxu0 0
    %344 = vmatprep.subr.bf16.mxu0 0
    %345 = vmatpush1.bf16.msra.mxu0 0
    %346 = vmatprep.subr.bf16.mxu0 0
    %347 = vmatpush1.bf16.msra.mxu0 0
    %348 = vmatprep.subr.bf16.mxu0 0
    %349 = vmatpush1.bf16.msra.mxu0 0
    %350 = vmatprep.subr.bf16.mxu0 0
    %351 = vmatpush1.bf16.msra.mxu0 0
    %352 = vmatprep.subr.bf16.mxu0 0
    %353 = vmatpush1.bf16.msra.mxu0 0
    %354 = vmatprep.subr.bf16.mxu0 0
    %355 = vmatpush1.bf16.msra.mxu0 0
    %356 = vmatprep.subr.bf16.mxu0 0
    %357 = vmatpush1.bf16.msra.mxu0 0
    %358 = vmatprep.subr.bf16.mxu0 0
    %359 = vmatpush1.bf16.msra.mxu0 0
    %360 = vmatprep.subr.bf16.mxu0 0
    %361 = vmatpush1.bf16.msra.mxu0 0
    %362 = vmatprep.mubr.bf16.mxu0 0
    %363 = vmatmul.mubr.bf16.gmra.mrb[0].mxu0 %v328
    %v364 = vpop.f32.mrb[0].mxu0
    %v365 = vadd.f32 %v94, %v364
    %v366 = vpop.f32.mrb[0].mxu0
    %v367 = vpop.f32.mrb[0].mxu0
    %v368 = vpop.f32.mrb[0].mxu0
    %369 = vdwg.mxu0
    %v371 = vrot.slane %v365, 2
    %v373 = vadd.f32 %v77, %v371
    %v374 = vxor.u32 %v373, 2147483648
    %v375 = vmul.f32 %v374, 1.442695
    %v376 = vpow.pop %v375
    %v377 = vadd.f32 %v376, 1.0
    %v378 = vrcp.pop %v377
    %v379 = vmul.f32 1.0, %v378
    %380 = vrot.lane.b32.xlu0 %v371, 64
    %v381 = vpop.permute.xlu0 %380
    %v383 = vmul.f32 %v379, %v381
    %385 = vrot.lane.b32.xlu0 %v383, 64
    %v386 = vpop.permute.xlu0 %385
    %v388 = vadd.f32 %v77, %v386
    %v389 = vtanh.pop %v388
    %v390 = vsub.f32 1.0, %v379
    %392 = vrot.lane.b32.xlu0 %v389, 96
    %v393 = vpop.permute.xlu0 %392
    %v395 = vmul.f32 %v390, %v393
    %v397 = vrot.slane %v321, 6
    %v399 = vmul.f32 %v379, %v397
    %v400 = vadd.f32 %v395, %v399
    %v401 = vpack.c.bf16 %v400, %v400
    %v403 = vrot.slane %v401, 3
    %404 = vrot.lane.b32.xlu0 %v403, 96
    %v405 = vpop.permute.xlu0 %404
    %v407 = vsel %vm38, %v405, 0
    %409 = vmatprep.subr.bf16.mxu0 0
    %410 = vmatpush1.bf16.msra.mxu0 %v87
    %411 = vmatprep.subr.bf16.mxu0 0
    %412 = vmatpush1.bf16.msra.mxu0 %v88
    %413 = vmatprep.subr.bf16.mxu0 0
    %414 = vmatpush1.bf16.msra.mxu0 0
    %415 = vmatprep.subr.bf16.mxu0 0
    %416 = vmatpush1.bf16.msra.mxu0 0
    %417 = vmatprep.subr.bf16.mxu0 0
    %418 = vmatpush1.bf16.msra.mxu0 0
    %419 = vmatprep.subr.bf16.mxu0 0
    %420 = vmatpush1.bf16.msra.mxu0 0
    %421 = vmatprep.subr.bf16.mxu0 0
    %422 = vmatpush1.bf16.msra.mxu0 0
    %423 = vmatprep.subr.bf16.mxu0 0
    %424 = vmatpush1.bf16.msra.mxu0 0
    %425 = vmatprep.subr.bf16.mxu0 0
    %426 = vmatpush1.bf16.msra.mxu0 0
    %427 = vmatprep.subr.bf16.mxu0 0
    %428 = vmatpush1.bf16.msra.mxu0 0
    %429 = vmatprep.subr.bf16.mxu0 0
    %430 = vmatpush1.bf16.msra.mxu0 0
    %431 = vmatprep.subr.bf16.mxu0 0
    %432 = vmatpush1.bf16.msra.mxu0 0
    %433 = vmatprep.subr.bf16.mxu0 0
    %434 = vmatpush1.bf16.msra.mxu0 0
    %435 = vmatprep.subr.bf16.mxu0 0
    %436 = vmatpush1.bf16.msra.mxu0 0
    %437 = vmatprep.subr.bf16.mxu0 0
    %438 = vmatpush1.bf16.msra.mxu0 0
    %439 = vmatprep.subr.bf16.mxu0 0
    %440 = vmatpush1.bf16.msra.mxu0 0
    %441 = vmatprep.mubr.bf16.mxu0 0
    %442 = vmatmul.mubr.bf16.gmra.mrb[0].mxu0 %v407
    %v443 = vpop.f32.mrb[0].mxu0
    %v444 = vadd.f32 %v94, %v443
    %v445 = vpop.f32.mrb[0].mxu0
    %v446 = vpop.f32.mrb[0].mxu0
    %v447 = vpop.f32.mrb[0].mxu0
    %448 = vdwg.mxu0
    %v449 = vadd.f32 %v80, %v444
    %v450 = vxor.u32 %v449, 2147483648
    %v451 = vmul.f32 %v450, 1.442695
    %v452 = vpow.pop %v451
    %v453 = vadd.f32 %v452, 1.0
    %v454 = vrcp.pop %v453
    %v455 = vmul.f32 1.0, %v454
    %457 = vrot.lane.b32.xlu0 %v444, 64
    %v458 = vpop.permute.xlu0 %457
    %v460 = vmul.f32 %v455, %v458
    %462 = vrot.lane.b32.xlu0 %v460, 64
    %v463 = vpop.permute.xlu0 %462
    %v465 = vadd.f32 %v80, %v463
    %v466 = vtanh.pop %v465
    %v467 = vsub.f32 1.0, %v455
    %469 = vrot.lane.b32.xlu0 %v466, 96
    %v470 = vpop.permute.xlu0 %469
    %v472 = vmul.f32 %v467, %v470
    %v474 = vrot.slane %v400, 6
    %v476 = vmul.f32 %v455, %v474
    %v477 = vadd.f32 %v472, %v476
    %v478 = vpack.c.bf16 %v477, %v477
    %480 = vrot.lane.b32.xlu0 %v478, 96
    %v481 = vpop.permute.xlu0 %480
    %v483 = vsel %vm38, %v481, 0
    %485 = vmatprep.subr.bf16.mxu0 0
    %486 = vmatpush1.bf16.msra.mxu0 %v87
    %487 = vmatprep.subr.bf16.mxu0 0
    %488 = vmatpush1.bf16.msra.mxu0 %v88
    %489 = vmatprep.subr.bf16.mxu0 0
    %490 = vmatpush1.bf16.msra.mxu0 0
    %491 = vmatprep.subr.bf16.mxu0 0
    %492 = vmatpush1.bf16.msra.mxu0 0
    %493 = vmatprep.subr.bf16.mxu0 0
    %494 = vmatpush1.bf16.msra.mxu0 0
    %495 = vmatprep.subr.bf16.mxu0 0
    %496 = vmatpush1.bf16.msra.mxu0 0
    %497 = vmatprep.subr.bf16.mxu0 0
    %498 = vmatpush1.bf16.msra.mxu0 0
    %499 = vmatprep.subr.bf16.mxu0 0
    %500 = vmatpush1.bf16.msra.mxu0 0
    %501 = vmatprep.subr.bf16.mxu0 0
    %502 = vmatpush1.bf16.msra.mxu0 0
    %503 = vmatprep.subr.bf16.mxu0 0
    %504 = vmatpush1.bf16.msra.mxu0 0
    %505 = vmatprep.subr.bf16.mxu0 0
    %506 = vmatpush1.bf16.msra.mxu0 0
    %507 = vmatprep.subr.bf16.mxu0 0
    %508 = vmatpush1.bf16.msra.mxu0 0
    %509 = vmatprep.subr.bf16.mxu0 0
    %510 = vmatpush1.bf16.msra.mxu0 0
    %511 = vmatprep.subr.bf16.mxu0 0
    %512 = vmatpush1.bf16.msra.mxu0 0
    %513 = vmatprep.subr.bf16.mxu0 0
    %514 = vmatpush1.bf16.msra.mxu0 0
    %515 = vmatprep.subr.bf16.mxu0 0
    %516 = vmatpush1.bf16.msra.mxu0 0
    %517 = vmatprep.mubr.bf16.mxu0 0
    %518 = vmatmul.mubr.bf16.gmra.mrb[0].mxu0 %v483
    %v519 = vpop.f32.mrb[0].mxu0
    %v520 = vadd.f32 %v94, %v519
    %v521 = vpop.f32.mrb[0].mxu0
    %v522 = vpop.f32.mrb[0].mxu0
    %v523 = vpop.f32.mrb[0].mxu0
    %524 = vdwg.mxu0
    %v526 = vrot.slane %v520, 6
    %v528 = vadd.f32 %v80, %v526
    %v529 = vxor.u32 %v528, 2147483648
    %v530 = vmul.f32 %v529, 1.442695
    %v531 = vpow.pop %v530
    %v532 = vadd.f32 %v531, 1.0
    %v533 = vrcp.pop %v532
    %v534 = vmul.f32 1.0, %v533
    %535 = vrot.lane.b32.xlu0 %v526, 64
    %v536 = vpop.permute.xlu0 %535
    %v538 = vmul.f32 %v534, %v536
    %540 = vrot.lane.b32.xlu0 %v538, 64
    %v541 = vpop.permute.xlu0 %540
    %v543 = vadd.f32 %v80, %v541
    %v544 = vtanh.pop %v543
    %v545 = vsub.f32 1.0, %v534
    %547 = vrot.lane.b32.xlu0 %v544, 96
    %v548 = vpop.permute.xlu0 %547
    %v550 = vmul.f32 %v545, %v548
    %v552 = vrot.slane %v477, 6
    %v554 = vmul.f32 %v534, %v552
    %v555 = vadd.f32 %v550, %v554
    %v556 = vpack.c.bf16 %v555, %v555
    %v558 = vrot.slane %v556, 1
    %559 = vrot.lane.b32.xlu0 %v558, 96
    %v560 = vpop.permute.xlu0 %559
    %v562 = vsel %vm38, %v560, 0
    %564 = vmatprep.subr.bf16.mxu0 0
    %565 = vmatpush1.bf16.msra.mxu0 %v87
    %566 = vmatprep.subr.bf16.mxu0 0
    %567 = vmatpush1.bf16.msra.mxu0 %v88
    %568 = vmatprep.subr.bf16.mxu0 0
    %569 = vmatpush1.bf16.msra.mxu0 0
    %570 = vmatprep.subr.bf16.mxu0 0
    %571 = vmatpush1.bf16.msra.mxu0 0
    %572 = vmatprep.subr.bf16.mxu0 0
    %573 = vmatpush1.bf16.msra.mxu0 0
    %574 = vmatprep.subr.bf16.mxu0 0
    %575 = vmatpush1.bf16.msra.mxu0 0
    %576 = vmatprep.subr.bf16.mxu0 0
    %577 = vmatpush1.bf16.msra.mxu0 0
    %578 = vmatprep.subr.bf16.mxu0 0
    %579 = vmatpush1.bf16.msra.mxu0 0
    %580 = vmatprep.subr.bf16.mxu0 0
    %581 = vmatpush1.bf16.msra.mxu0 0
    %582 = vmatprep.subr.bf16.mxu0 0
    %583 = vmatpush1.bf16.msra.mxu0 0
    %584 = vmatprep.subr.bf16.mxu0 0
    %585 = vmatpush1.bf16.msra.mxu0 0
    %586 = vmatprep.subr.bf16.mxu0 0
    %587 = vmatpush1.bf16.msra.mxu0 0
    %588 = vmatprep.subr.bf16.mxu0 0
    %589 = vmatpush1.bf16.msra.mxu0 0
    %590 = vmatprep.subr.bf16.mxu0 0
    %591 = vmatpush1.bf16.msra.mxu0 0
    %592 = vmatprep.subr.bf16.mxu0 0
    %593 = vmatpush1.bf16.msra.mxu0 0
    %594 = vmatprep.subr.bf16.mxu0 0
    %595 = vmatpush1.bf16.msra.mxu0 0
    %596 = vmatprep.mubr.bf16.mxu0 0
    %597 = vmatmul.mubr.bf16.gmra.mrb[0].mxu0 %v562
    %v598 = vpop.f32.mrb[0].mxu0
    %v599 = vadd.f32 %v94, %v598
    %v600 = vpop.f32.mrb[0].mxu0
    %v601 = vpop.f32.mrb[0].mxu0
    %v602 = vpop.f32.mrb[0].mxu0
    %603 = vdwg.mxu0
    %v605 = vrot.slane %v599, 4
    %v607 = vadd.f32 %v80, %v605
    %v608 = vxor.u32 %v607, 2147483648
    %v609 = vmul.f32 %v608, 1.442695
    %v610 = vpow.pop %v609
    %v611 = vadd.f32 %v610, 1.0
    %v612 = vrcp.pop %v611
    %v613 = vmul.f32 1.0, %v612
    %614 = vrot.lane.b32.xlu0 %v605, 64
    %v615 = vpop.permute.xlu0 %614
    %v617 = vmul.f32 %v613, %v615
    %619 = vrot.lane.b32.xlu0 %v617, 64
    %v620 = vpop.permute.xlu0 %619
    %v622 = vadd.f32 %v80, %v620
    %v623 = vtanh.pop %v622
    %v624 = vsub.f32 1.0, %v613
    %626 = vrot.lane.b32.xlu0 %v623, 96
    %v627 = vpop.permute.xlu0 %626
    %v629 = vmul.f32 %v624, %v627
    %v631 = vrot.slane %v555, 6
    %v633 = vmul.f32 %v613, %v631
    %v634 = vadd.f32 %v629, %v633
    %v635 = vpack.c.bf16 %v634, %v634
    %v637 = vrot.slane %v635, 2
    %638 = vrot.lane.b32.xlu0 %v637, 96
    %v639 = vpop.permute.xlu0 %638
    %v641 = vsel %vm38, %v639, 0
    %643 = vmatprep.subr.bf16.mxu0 0
    %644 = vmatpush1.bf16.msra.mxu0 %v87
    %645 = vmatprep.subr.bf16.mxu0 0
    %646 = vmatpush1.bf16.msra.mxu0 %v88
    %647 = vmatprep.subr.bf16.mxu0 0
    %648 = vmatpush1.bf16.msra.mxu0 0
    %649 = vmatprep.subr.bf16.mxu0 0
    %650 = vmatpush1.bf16.msra.mxu0 0
    %651 = vmatprep.subr.bf16.mxu0 0
    %652 = vmatpush1.bf16.msra.mxu0 0
    %653 = vmatprep.subr.bf16.mxu0 0
    %654 = vmatpush1.bf16.msra.mxu0 0
    %655 = vmatprep.subr.bf16.mxu0 0
    %656 = vmatpush1.bf16.msra.mxu0 0
    %657 = vmatprep.subr.bf16.mxu0 0
    %658 = vmatpush1.bf16.msra.mxu0 0
    %659 = vmatprep.subr.bf16.mxu0 0
    %660 = vmatpush1.bf16.msra.mxu0 0
    %661 = vmatprep.subr.bf16.mxu0 0
    %662 = vmatpush1.bf16.msra.mxu0 0
    %663 = vmatprep.subr.bf16.mxu0 0
    %664 = vmatpush1.bf16.msra.mxu0 0
    %665 = vmatprep.subr.bf16.mxu0 0
    %666 = vmatpush1.bf16.msra.mxu0 0
    %667 = vmatprep.subr.bf16.mxu0 0
    %668 = vmatpush1.bf16.msra.mxu0 0
    %669 = vmatprep.subr.bf16.mxu0 0
    %670 = vmatpush1.bf16.msra.mxu0 0
    %671 = vmatprep.subr.bf16.mxu0 0
    %672 = vmatpush1.bf16.msra.mxu0 0
    %673 = vmatprep.subr.bf16.mxu0 0
    %674 = vmatpush1.bf16.msra.mxu0 0
    %675 = vmatprep.mubr.bf16.mxu0 0
    %676 = vmatmul.mubr.bf16.gmra.mrb[0].mxu0 %v641
    %v677 = vpop.f32.mrb[0].mxu0
    %v678 = vadd.f32 %v94, %v677
    %v679 = vpop.f32.mrb[0].mxu0
    %v680 = vpop.f32.mrb[0].mxu0
    %v681 = vpop.f32.mrb[0].mxu0
    %682 = vdwg.mxu0
    %v684 = vrot.slane %v678, 2
    %v686 = vadd.f32 %v80, %v684
    %v687 = vxor.u32 %v686, 2147483648
    %v688 = vmul.f32 %v687, 1.442695
    %v689 = vpow.pop %v688
    %v690 = vadd.f32 %v689, 1.0
    %v691 = vrcp.pop %v690
    %v692 = vmul.f32 1.0, %v691
    %693 = vrot.lane.b32.xlu0 %v684, 64
    %v694 = vpop.permute.xlu0 %693
    %v696 = vmul.f32 %v692, %v694
    %698 = vrot.lane.b32.xlu0 %v696, 64
    %v699 = vpop.permute.xlu0 %698
    %v701 = vadd.f32 %v80, %v699
    %v702 = vtanh.pop %v701
    %v703 = vsub.f32 1.0, %v692
    %705 = vrot.lane.b32.xlu0 %v702, 96
    %v706 = vpop.permute.xlu0 %705
    %v708 = vmul.f32 %v703, %v706
    %v710 = vrot.slane %v634, 6
    %v712 = vmul.f32 %v692, %v710
    %v713 = vadd.f32 %v708, %v712
    %715 = vrot.lane.b32.xlu0 %v713, 96
    %v716 = vpop.permute.xlu0 %715
    %vm718 = vcmask 261126
    %719 = vst.msk [vmem:[#allocation2 - $0x6] sm:$0xc0] %vm718, %v716
    // Predicated region
    $region22: #{question_module.1} parent=1 // pred_check
      _
    $region23: #{question_module.1} parent=1 // pred_check_branch
      %721 = sbr.rel (0) target = $region25
    $region24: #{question_module.1} parent=1 // pred_region
      %s723 = ssub.s32 32, 32
      %724 = vsyncadd [#allocation3], %s723
      %s726 = sshll.u32 [#allocation2], 4
      %s727 = int_to_ptr.vmem [resolvable:$true] %s726
      %729 = dma.vmem_to_hbm [thread:$0]  %s727, 32, %s5, [#allocation3]
    $region25: #{question_module.1} parent=1 // pred_fallthru
      _
    // Predicated region
    $region26: #{question_module.1} parent=1 // pred_check
      _
    $region27: #{question_module.1} parent=1 // pred_check_branch
      %731 = sbr.rel (0) target = $region29
    $region28: #{question_module.1} parent=1 // pred_region
      %732 = dma.done [#allocation3], 32
    $region29: #{question_module.1} parent=1 // pred_fallthru
      _
    %733 = vsyncpa [#allocation3], 1

</llo_original>
